<compile_context>
chip_gen: v7x
topology: tpu7x:2x2x1
jax: 0.10.0
libtpu: 0.0.40
codegen_flags: <defaults>
</compile_context>

<pallas_src>
import functools

import jax
import jax.numpy as jnp
from jax.experimental import pallas as pl
from jax.experimental.pallas import tpu as pltpu


TEMPERATURE = 1.0
EPSILON = 1e-8            # constant shift -> exactly cancels in log_softmax
IGNORE_INDEX = -100

_LANE = 128
_SUBLANE = 8
_MAX_ROW_TILE = 1024
_TARGET_ROW_TILE = 256    # keep row tiles at/above the measured efficiency knee
_MIN_V_TILE = 512         # don't shrink vocab tiles below this


def _round_up(x, m):
    return ((x + m - 1) // m) * m


def _vmem_caps():
    """Generation-aware (budget, limit) in bytes."""
    cap = None
    try:
        info = pltpu.get_tpu_info()
        cap = getattr(info, "vmem_capacity_bytes", None)
    except Exception:
        cap = None
    if not cap:
        cap = 64 * 1024 * 1024          # assume the tightest case (v7x per-TC)
    limit = min(int(0.85 * cap), cap - 8 * 1024 * 1024)   # headroom for Mosaic
    budget = int(0.70 * limit)
    return budget, limit


def _pick_tiles(n_rows, v, in_itemsize, vmem_budget, max_v_tile=None):
    """Pick (row_tile, vocab_tile) that fit the VMEM budget."""
    tv = _round_up(v, _LANE)
    if max_v_tile is not None:
        tv = min(tv, _round_up(max_v_tile, _LANE))

    def per_row_bytes(tv_):
        # 2 inputs, double-buffered, in their HBM dtype
        # + ~5 f32-wide live temporaries per lane (scaled, exp, int32 iota,
        #   one-hot / select intermediates)
        # + lane-padded (TR,1) tgt / loss / m / l / t buffers.
        return (2 * 2 * in_itemsize + 5 * 4) * tv_ + 8 * _LANE * 4

    def row_tile(tv_):
        tr = vmem_budget // per_row_bytes(tv_)
        tr = max(_SUBLANE, min(tr, _MAX_ROW_TILE, _round_up(n_rows, _SUBLANE)))
        # keep >= 2 row tiles whenever possible so the "parallel" row axis can
        # be sharded across both v7x TensorCores
        tr = min(tr, _round_up(-(-n_rows // 2), _SUBLANE))
        return (tr // _SUBLANE) * _SUBLANE

    # shrink the vocab tile until the row tile is comfortably large
    while tv > _MIN_V_TILE and row_tile(tv) < _TARGET_ROW_TILE:
        tv = _round_up(tv // 2, _LANE)
    return row_tile(tv), tv


def _qce_kernel(re_ref, im_ref, tgt_ref, loss_ref, m_sc, l_sc, t_sc,
                *, v_valid, v_tile, inv_temp, need_mask):
    j = pl.program_id(1)                              # vocab-tile index

    @pl.when(j == 0)
    def _init():
        m_sc[...] = jnp.full_like(m_sc, -1e30)
        l_sc[...] = jnp.zeros_like(l_sc)
        t_sc[...] = jnp.zeros_like(t_sc)

    re = re_ref[...].astype(jnp.float32)              # (TR, TV)
    im = im_ref[...].astype(jnp.float32)              # (TR, TV)
    scaled = re * re + im * im                        # |z|^2
    if inv_temp != 1.0:
        scaled = scaled * inv_temp
    # NOTE: the reference "+ epsilon" is a uniform shift of every class logit
    # and cancels exactly inside log_softmax -> dropped.

    tr, tv = scaled.shape
    lane = jax.lax.broadcasted_iota(jnp.int32, (tr, tv), 1) + j * v_tile
    if need_mask:
        # vocab-padding lanes must not contribute to the softmax
        scaled = jnp.where(lane < v_valid, scaled, -1e30)

    tgt = tgt_ref[...]                                # (TR, 1) int32
    # the target-class logit lives in exactly one vocab tile -> accumulate it
    t_sc[...] += jnp.sum(jnp.where(lane == tgt, scaled, 0.0),
                         axis=-1, keepdims=True)

    # online logsumexp across vocab tiles
    m_prev = m_sc[...]
    m_new = jnp.maximum(m_prev, jnp.max(scaled, axis=-1, keepdims=True))
    l_sc[...] = (jnp.exp(m_prev - m_new) * l_sc[...]
                 + jnp.sum(jnp.exp(scaled - m_new), axis=-1, keepdims=True))
    m_sc[...] = m_new

    @pl.when(j == pl.num_programs(1) - 1)
    def _finalize():
        valid = tgt != IGNORE_INDEX                   # (TR, 1) bool
        nll = (m_sc[...] + jnp.log(l_sc[...])) - t_sc[...]
        loss_ref[...] = jnp.where(valid, nll, 0.0)


def quantum_inspired_cross_entropy(logits_re, logits_im, target,
                                   temperature=TEMPERATURE, max_v_tile=None):
    """logits_re / logits_im: (..., V) float32 or bfloat16, target: (...,) int."""
    V = logits_re.shape[-1]
    re = logits_re.reshape(-1, V)
    im = logits_im.reshape(-1, V)
    tgt = target.reshape(-1).astype(jnp.int32)
    N = re.shape[0]

    vmem_budget, vmem_limit = _vmem_caps()
    TR, TV = _pick_tiles(N, V, jnp.dtype(re.dtype).itemsize, vmem_budget,
                         max_v_tile)
    V_pad = _round_up(V, TV)
    N_pad = _round_up(N, TR)

    # pad vocab to a tile multiple (masked inside the kernel) and pad rows to a
    # tile multiple with IGNORE_INDEX targets (produce zero loss)
    if V_pad != V:
        re = jnp.pad(re, ((0, 0), (0, V_pad - V)))
        im = jnp.pad(im, ((0, 0), (0, V_pad - V)))
    if N_pad != N:
        re = jnp.pad(re, ((0, N_pad - N), (0, 0)))
        im = jnp.pad(im, ((0, N_pad - N), (0, 0)))
        tgt = jnp.pad(tgt, (0, N_pad - N), constant_values=IGNORE_INDEX)
    tgt2d = tgt.reshape(-1, 1)

    grid = (N_pad // TR, V_pad // TV)                 # rows parallel, vocab last
    kernel = functools.partial(
        _qce_kernel, v_valid=V, v_tile=TV,
        inv_temp=1.0 / float(temperature), need_mask=(V_pad != V))

    loss_rows = pl.pallas_call(
        kernel,
        out_shape=jax.ShapeDtypeStruct((N_pad, 1), jnp.float32),
        grid_spec=pltpu.PrefetchScalarGridSpec(
            num_scalar_prefetch=0,
            grid=grid,
            in_specs=[
                pl.BlockSpec((TR, TV), lambda i, j: (i, j)),
                pl.BlockSpec((TR, TV), lambda i, j: (i, j)),
                pl.BlockSpec((TR, 1), lambda i, j: (i, 0)),
            ],
            out_specs=pl.BlockSpec((TR, 1), lambda i, j: (i, 0)),
            scratch_shapes=[
                pltpu.VMEM((TR, 1), jnp.float32),   # running max m
                pltpu.VMEM((TR, 1), jnp.float32),   # running sum l
                pltpu.VMEM((TR, 1), jnp.float32),   # target-class logit
            ],
        ),
        compiler_params=pltpu.CompilerParams(
            dimension_semantics=("parallel", "arbitrary"),
            vmem_limit_bytes=vmem_limit,
        ),
    )(re, im, tgt2d)

    # mean over non-ignored targets (torch nll_loss reduction='mean');
    # returns NaN when every target is ignore_index, matching PyTorch.
    n_valid = jnp.sum((target.reshape(-1) != IGNORE_INDEX).astype(jnp.float32))
    return jnp.sum(loss_rows) / n_valid


def _reference(logits_re, logits_im, target, temperature=TEMPERATURE):
    V = logits_re.shape[-1]
    re = logits_re.reshape(-1, V).astype(jnp.float32)
    im = logits_im.reshape(-1, V).astype(jnp.float32)
    t = target.reshape(-1)
    mag2 = re * re + im * im
    scaled = mag2 / temperature + EPSILON
    logp = jax.nn.log_softmax(scaled, axis=-1)
    valid = t != IGNORE_INDEX
    safe_t = jnp.where(valid, t, 0)
    picked = jnp.take_along_axis(logp, safe_t[:, None], axis=-1)[:, 0]
    nll = jnp.where(valid, -picked, 0.0)
    return jnp.sum(nll) / jnp.sum(valid.astype(jnp.float32))


if __name__ == "__main__":
    key = jax.random.PRNGKey(0)
    k_re, k_im, k_tgt, k_ign = jax.random.split(key, 4)

    # --- check 1: lane-aligned vocab, aligned row count ---------------------
    B, S, V = 2, 8, 128
    logits_re = jax.random.normal(k_re, (B, S, V), dtype=jnp.float32)
    logits_im = jax.random.normal(k_im, (B, S, V), dtype=jnp.float32)
    target = jax.random.randint(k_tgt, (B, S), 0, V, dtype=jnp.int32)
    ignore_mask = jax.random.bernoulli(k_ign, p=0.2, shape=(B, S))
    target = jnp.where(ignore_mask, IGNORE_INDEX, target)

    loss = jax.block_until_ready(
        quantum_inspired_cross_entropy(logits_re, logits_im, target))
    ref = _reference(logits_re, logits_im, target)
    assert jnp.allclose(loss, ref, atol=1e-5, rtol=1e-5), (loss, ref)

    # --- check 2: un-aligned vocab / row count (padding + lane-mask path) ---
    B2, S2, V2 = 3, 5, 200
    k_re2, k_im2, k_tg2 = jax.random.split(jax.random.PRNGKey(1), 3)
    re2 = jax.random.normal(k_re2, (B2, S2, V2), dtype=jnp.float32)
    im2 = jax.random.normal(k_im2, (B2, S2, V2), dtype=jnp.float32)
    tg2 = jax.random.randint(k_tg2, (B2, S2), 0, V2, dtype=jnp.int32)
    tg2 = tg2.at[0, 0].set(IGNORE_INDEX)

    loss2 = jax.block_until_ready(quantum_inspired_cross_entropy(re2, im2, tg2))
    ref2 = _reference(re2, im2, tg2)
    assert jnp.allclose(loss2, ref2, atol=1e-5, rtol=1e-5), (loss2, ref2)

    # --- check 3: forced multi-vocab-tile online-logsumexp path -------------
    k_re3, k_im3, k_tg3 = jax.random.split(jax.random.PRNGKey(2), 3)
    B3, S3, V3 = 4, 8, 512
    re3 = jax.random.normal(k_re3, (B3, S3, V3), dtype=jnp.float32)
    im3 = jax.random.normal(k_im3, (B3, S3, V3), dtype=jnp.float32)
    tg3 = jax.random.randint(k_tg3, (B3, S3), 0, V3, dtype=jnp.int32)

    loss3 = jax.block_until_ready(
        quantum_inspired_cross_entropy(re3, im3, tg3, max_v_tile=128))
    ref3 = _reference(re3, im3, tg3)
    assert jnp.allclose(loss3, ref3, atol=1e-5, rtol=1e-5), (loss3, ref3)

    print("KERNEL_OK")
</pallas_src>

<mosaic_0001>
module attributes {stable_mosaic.version = 11 : i64} {
  func.func @_qce_kernel(%arg0: i32, %arg1: i32, %arg2: memref<8x128xf32, #tpu.memory_space<vmem>>, %arg3: memref<8x128xf32, #tpu.memory_space<vmem>>, %arg4: memref<8x1xi32, #tpu.memory_space<vmem>>, %arg5: memref<8x1xf32, #tpu.memory_space<vmem>>, %arg6: memref<8x1xf32, #tpu.memory_space<vmem>>, %arg7: memref<8x1xf32, #tpu.memory_space<vmem>>, %arg8: memref<8x1xf32, #tpu.memory_space<vmem>>) attributes {dimension_semantics = [#tpu.dimension_semantics<parallel>, #tpu.dimension_semantics<arbitrary>], iteration_bounds = array<i64: 2, 1>, scalar_prefetch = 0 : i64, scratch_operands = 3 : i64, tpu.core_type = #tpu.core_type<tc>, window_params = [{transform_indices = @transform_0, window_bounds = array<i64: 8, 128>}, {transform_indices = @transform_1, window_bounds = array<i64: 8, 128>}, {transform_indices = @transform_2, window_bounds = array<i64: 8, 1>}, {transform_indices = @transform_3, window_bounds = array<i64: 8, 1>}]} {
    %c0_i32 = arith.constant 0 : i32
    %0 = arith.cmpi eq, %arg1, %c0_i32 : i32
    %1 = arith.extui %0 : i1 to i32
    %c0_i32_0 = arith.constant 0 : i32
    %2 = arith.cmpi ne, %1, %c0_i32_0 : i32
    scf.if %2 {
      %cst_23 = arith.constant -1.000000e+30 : f32
      %41 = vector.broadcast %cst_23 : f32 to vector<8x1xf32>
      %c0_24 = arith.constant 0 : index
      %c0_25 = arith.constant 0 : index
      %42 = vector.load %arg6[%c0_24, %c0_25] : memref<8x1xf32, #tpu.memory_space<vmem>>, vector<8x1xf32>
      tpu.vector_store %arg6[%c0_24, %c0_25], %41 {strides = array<i32>} : memref<8x1xf32, #tpu.memory_space<vmem>>, vector<8x1xf32>,
      %cst_26 = arith.constant 0.000000e+00 : f32
      %43 = vector.broadcast %cst_26 : f32 to vector<8x1xf32>
      %c0_27 = arith.constant 0 : index
      %c0_28 = arith.constant 0 : index
      %44 = vector.load %arg7[%c0_27, %c0_28] : memref<8x1xf32, #tpu.memory_space<vmem>>, vector<8x1xf32>
      tpu.vector_store %arg7[%c0_27, %c0_28], %43 {strides = array<i32>} : memref<8x1xf32, #tpu.memory_space<vmem>>, vector<8x1xf32>,
      %cst_29 = arith.constant 0.000000e+00 : f32
      %45 = vector.broadcast %cst_29 : f32 to vector<8x1xf32>
      %c0_30 = arith.constant 0 : index
      %c0_31 = arith.constant 0 : index
      %46 = vector.load %arg8[%c0_30, %c0_31] : memref<8x1xf32, #tpu.memory_space<vmem>>, vector<8x1xf32>
      tpu.vector_store %arg8[%c0_30, %c0_31], %45 {strides = array<i32>} : memref<8x1xf32, #tpu.memory_space<vmem>>, vector<8x1xf32>,
    } else {
    }
    %c0 = arith.constant 0 : index
    %c0_1 = arith.constant 0 : index
    %3 = vector.load %arg2[%c0, %c0_1] : memref<8x128xf32, #tpu.memory_space<vmem>>, vector<8x128xf32>
    %c0_2 = arith.constant 0 : index
    %c0_3 = arith.constant 0 : index
    %4 = vector.load %arg3[%c0_2, %c0_3] : memref<8x128xf32, #tpu.memory_space<vmem>>, vector<8x128xf32>
    %5 = arith.mulf %3, %3 : vector<8x128xf32>
    %6 = arith.mulf %4, %4 : vector<8x128xf32>
    %7 = arith.addf %5, %6 : vector<8x128xf32>
    %8 = tpu.iota {dimensions = array<i32: 1>} : vector<8x128xi32>
    %c128_i32 = arith.constant 128 : i32
    %9 = arith.muli %arg1, %c128_i32 : i32
    %10 = vector.broadcast %9 : i32 to vector<8x128xi32>
    %11 = arith.addi %8, %10 : vector<8x128xi32>
    %c0_4 = arith.constant 0 : index
    %c0_5 = arith.constant 0 : index
    %12 = vector.load %arg4[%c0_4, %c0_5] : memref<8x1xi32, #tpu.memory_space<vmem>>, vector<8x1xi32>
    %c0_6 = arith.constant 0 : index
    %c0_7 = arith.constant 0 : index
    %13 = vector.load %arg8[%c0_6, %c0_7] : memref<8x1xf32, #tpu.memory_space<vmem>>, vector<8x1xf32>
    %14 = vector.broadcast %12 : vector<8x1xi32> to vector<8x128xi32>
    %15 = arith.cmpi eq, %11, %14 : vector<8x128xi32>
    %cst = arith.constant 0.000000e+00 : f32
    %16 = vector.broadcast %cst : f32 to vector<8x128xf32>
    %17 = arith.select %15, %7, %16 : vector<8x128xi1>, vector<8x128xf32>
    %cst_8 = arith.constant dense<0.000000e+00> : vector<8xf32>
    %18 = vector.multi_reduction <add>, %17, %cst_8 [1] : vector<8x128xf32> to vector<8xf32>
    %19 = vector.shape_cast %18 : vector<8xf32> to vector<8x1xf32>
    %20 = arith.addf %13, %19 : vector<8x1xf32>
    %c0_9 = arith.constant 0 : index
    %c0_10 = arith.constant 0 : index
    %21 = vector.load %arg8[%c0_9, %c0_10] : memref<8x1xf32, #tpu.memory_space<vmem>>, vector<8x1xf32>
    tpu.vector_store %arg8[%c0_9, %c0_10], %20 {strides = array<i32>} : memref<8x1xf32, #tpu.memory_space<vmem>>, vector<8x1xf32>,
    %c0_11 = arith.constant 0 : index
    %c0_12 = arith.constant 0 : index
    %22 = vector.load %arg6[%c0_11, %c0_12] : memref<8x1xf32, #tpu.memory_space<vmem>>, vector<8x1xf32>
    %cst_13 = arith.constant dense<0xFF800000> : vector<8xf32>
    %23 = vector.multi_reduction <maximumf>, %7, %cst_13 [1] : vector<8x128xf32> to vector<8xf32>
    %24 = vector.shape_cast %23 : vector<8xf32> to vector<8x1xf32>
    %25 = arith.maximumf %22, %24 : vector<8x1xf32>
    %26 = arith.subf %22, %25 : vector<8x1xf32>
    %27 = math.exp %26 : vector<8x1xf32>
    %c0_14 = arith.constant 0 : index
    %c0_15 = arith.constant 0 : index
    %28 = vector.load %arg7[%c0_14, %c0_15] : memref<8x1xf32, #tpu.memory_space<vmem>>, vector<8x1xf32>
    %29 = arith.mulf %27, %28 : vector<8x1xf32>
    %30 = vector.broadcast %25 : vector<8x1xf32> to vector<8x128xf32>
    %31 = arith.subf %7, %30 : vector<8x128xf32>
    %32 = math.exp %31 : vector<8x128xf32>
    %cst_16 = arith.constant dense<0.000000e+00> : vector<8xf32>
    %33 = vector.multi_reduction <add>, %32, %cst_16 [1] : vector<8x128xf32> to vector<8xf32>
    %34 = vector.shape_cast %33 : vector<8xf32> to vector<8x1xf32>
    %35 = arith.addf %29, %34 : vector<8x1xf32>
    %c0_17 = arith.constant 0 : index
    %c0_18 = arith.constant 0 : index
    %36 = vector.load %arg7[%c0_17, %c0_18] : memref<8x1xf32, #tpu.memory_space<vmem>>, vector<8x1xf32>
    tpu.vector_store %arg7[%c0_17, %c0_18], %35 {strides = array<i32>} : memref<8x1xf32, #tpu.memory_space<vmem>>, vector<8x1xf32>,
    %c0_19 = arith.constant 0 : index
    %c0_20 = arith.constant 0 : index
    %37 = vector.load %arg6[%c0_19, %c0_20] : memref<8x1xf32, #tpu.memory_space<vmem>>, vector<8x1xf32>
    tpu.vector_store %arg6[%c0_19, %c0_20], %25 {strides = array<i32>} : memref<8x1xf32, #tpu.memory_space<vmem>>, vector<8x1xf32>,
    %c0_i32_21 = arith.constant 0 : i32
    %38 = arith.cmpi eq, %arg1, %c0_i32_21 : i32
    %39 = arith.extui %38 : i1 to i32
    %c0_i32_22 = arith.constant 0 : i32
    %40 = arith.cmpi ne, %39, %c0_i32_22 : i32
    scf.if %40 {
      %c-100_i32 = arith.constant -100 : i32
      %41 = vector.broadcast %c-100_i32 : i32 to vector<8x1xi32>
      %42 = arith.cmpi ne, %12, %41 : vector<8x1xi32>
      %c0_23 = arith.constant 0 : index
      %c0_24 = arith.constant 0 : index
      %43 = vector.load %arg6[%c0_23, %c0_24] : memref<8x1xf32, #tpu.memory_space<vmem>>, vector<8x1xf32>
      %c0_25 = arith.constant 0 : index
      %c0_26 = arith.constant 0 : index
      %44 = vector.load %arg7[%c0_25, %c0_26] : memref<8x1xf32, #tpu.memory_space<vmem>>, vector<8x1xf32>
      %45 = math.log %44 : vector<8x1xf32>
      %46 = arith.addf %43, %45 : vector<8x1xf32>
      %c0_27 = arith.constant 0 : index
      %c0_28 = arith.constant 0 : index
      %47 = vector.load %arg8[%c0_27, %c0_28] : memref<8x1xf32, #tpu.memory_space<vmem>>, vector<8x1xf32>
      %48 = arith.subf %46, %47 : vector<8x1xf32>
      %cst_29 = arith.constant 0.000000e+00 : f32
      %49 = vector.broadcast %cst_29 : f32 to vector<8x1xf32>
      %50 = arith.select %42, %48, %49 : vector<8x1xi1>, vector<8x1xf32>
      %c0_30 = arith.constant 0 : index
      %c0_31 = arith.constant 0 : index
      %51 = vector.load %arg5[%c0_30, %c0_31] : memref<8x1xf32, #tpu.memory_space<vmem>>, vector<8x1xf32>
      tpu.vector_store %arg5[%c0_30, %c0_31], %50 {strides = array<i32>} : memref<8x1xf32, #tpu.memory_space<vmem>>, vector<8x1xf32>,
    } else {
    }
    return
  }
  func.func @transform_0(%arg0: i32, %arg1: i32) -> (i32, i32) {
    %c0_i32 = arith.constant 0 : i32
    return %arg0, %arg1 : i32, i32
  }
  func.func @transform_1(%arg0: i32, %arg1: i32) -> (i32, i32) {
    %c0_i32 = arith.constant 0 : i32
    return %arg0, %arg1 : i32, i32
  }
  func.func @transform_2(%arg0: i32, %arg1: i32) -> (i32, i32) {
    %c0_i32 = arith.constant 0 : i32
    %c0_i32_0 = arith.constant 0 : i32
    return %arg0, %c0_i32 : i32, i32
  }
  func.func @transform_3(%arg0: i32, %arg1: i32) -> (i32, i32) {
    %c0_i32 = arith.constant 0 : i32
    %c0_i32_0 = arith.constant 0 : i32
    return %arg0, %c0_i32 : i32, i32
  }
}

</mosaic_0001>

<llo_original>
// kernel: tpu_custom_call.1
$region0: #{tpu_custom_call.1}
  #allocation0 [shape = 'u32[]', space=smem, size = 0x4, offset = 0x4, fixed_abs, tag = 'smem constant byte address 0x4 - core index']
  #allocation1 [shape = 'u32[144,128]{1,0:T(1,128)}', space=vmem, size = 0x12000, scoped, tag = 'internal scratch']
  #allocation2 [shape = 'f32[8,1]{1,0:T(8,128)}', space=vmem, size = 0x1000, scoped, tag = 'scratch operand']
  #allocation3 [shape = 'f32[8,1]{1,0:T(8,128)}', space=vmem, size = 0x1000, scoped, tag = 'scratch operand']
  #allocation4 [shape = 'f32[8,1]{1,0:T(8,128)}', space=vmem, size = 0x1000, scoped, tag = 'scratch operand']
  %s0 = inlined_call_operand.vmem [shape: f32[16,128], index: 0, kind: input, shape index: {}]
  %s1 = inlined_call_operand.hbm [shape: f32[16,128], index: 1, kind: input, shape index: {}]
  %s2 = inlined_call_operand.vmem [shape: s32[16,1], index: 2, kind: input, shape index: {}]
  %s3 = inlined_call_operand.vmem [shape: f32[16,1], index: 3, kind: output, shape index: {}]
  %s4 = sld [smem:[#allocation0]]
  $region57: #{tpu_custom_call.1} parent=0
    _
  %s6 = ssub.s32 1, %s4
  %s7 = scalar_select 0, %s6, %s4
  $region1: #{tpu_custom_call.1} parent=0
    #allocation5 [shape = 'u8[8192]{0}', space=vmem, size = 0x2000, scoped, tag = 'input window, operand 1']
    #allocation6 [shape = 's32[2]{0}', space=sflag, size = 0x8, scoped, tag = 'scoped memory for tpu_custom_call.1']
    %8 = vsyncpa [#allocation6], 0
    %s9 = scalar_lea.sflag [#allocation6], 1
    %10 = vsyncpa %s9, 0
    loop: start=0, step=1, limit=4
    $region2: #{tpu_custom_call.1} parent=1 // loop_pre_header
      _
    $region3: #{tpu_custom_call.1} parent=1 // loop_header
      %s12 = sphi 0, %s16
      %p13 = scmp.ge.s32.totalorder %s12, 4
      %s19 = sphi 0, %s31
      %s20 = sphi 0, %s27
      %s21 = sphi 0, %s19
      %s22 = sphi 0, %s20
      %s23 = sphi 0, %s21
      %s24 = sphi 0, %s22
      %s36 = sphi 0, %s38
      %s39 = sphi 0, %s36
      %s40 = sphi 0, %s39
      %s56 = sphi 0, %s40
      %s64 = sphi 0, %s66
      %s67 = sphi 0, %s64
      %s68 = sphi 0, %s67
      %s84 = sphi 0, %s68
      %s90 = sphi 0, %s92
      %s93 = sphi 0, %s90
      %s94 = sphi 0, %s93
      %s110 = sphi 0, %s94
      %s116 = sphi 0, %s118
      %s119 = sphi 0, %s116
      %s120 = sphi 0, %s119
      %s136 = sphi 0, %s120
    $region4: #{tpu_custom_call.1} parent=1 // loop_header_branch
      %15 = sbr.rel (%p13) target = $region8
    $region5: #{tpu_custom_call.1} parent=1 // loop_body
      %s17 = ssub.s32 %s12, 1
      %s18 = ssub.s32 %s12, 2
      %s25 = sadd.s32 1, %s20
      %p26 = scmp.ge.s32.totalorder %s25, 1
      %s27 = scalar_select %p26, 0, %s25
      %s28 = sadd.s32 1, %s19
      %s29 = scalar_select %p26, %s28, %s19
      %p30 = scmp.ge.s32.totalorder %s29, 2
      %s31 = scalar_select %p30, 0, %s29
      %s32 = ssub.s32 %s19, %s31
      %s33 = ssub.s32 %s20, %s27
      %s34 = sor.u32 %s32, %s33
      %p35 = scmp.eq.s32.totalorder %s34, 0
      %s37 = sadd.s32 %s36, 1
      %s38 = scalar_select %p35, %s36, %s37
      %p41 = pneg %p35
      %p42 = scmp.eq.s32.totalorder %s12, 1
      %p43 = por %p41, %p42
      %p44 = scmp.ne.s32.totalorder %s36, %s39
      %p45 = scmp.eq.s32.totalorder %s12, 0
      %p46 = por %p44, %p45
      %p47 = scmp.ne.s32.totalorder %s36, %s39
      %p48 = scmp.eq.s32.totalorder %s17, 1
      %p49 = por %p47, %p48
      %p50 = scmp.ne.s32.totalorder %s39, %s40
      %p51 = scmp.eq.s32.totalorder %s17, 0
      %p52 = por %p50, %p51
      %p53 = scmp.ne.s32.totalorder %s39, %s40
      %p54 = scmp.eq.s32.totalorder %s18, 1
      %p55 = por %p53, %p54
      %p57 = scmp.ne.s32.totalorder %s40, %s56
      %p58 = scmp.eq.s32.totalorder %s18, 0
      %p59 = por %p57, %p58
      %s60 = ssub.s32 %s19, %s31
      %s61 = ssub.s32 %s20, %s27
      %s62 = sor.u32 %s60, %s61
      %p63 = scmp.eq.s32.totalorder %s62, 0
      %s65 = sadd.s32 %s64, 1
      %s66 = scalar_select %p63, %s64, %s65
      %p69 = pneg %p63
      %p70 = scmp.eq.s32.totalorder %s12, 1
      %p71 = por %p69, %p70
      %p72 = scmp.ne.s32.totalorder %s64, %s67
      %p73 = scmp.eq.s32.totalorder %s12, 0
      %p74 = por %p72, %p73
      %p75 = scmp.ne.s32.totalorder %s64, %s67
      %p76 = scmp.eq.s32.totalorder %s17, 1
      %p77 = por %p75, %p76
      %p78 = scmp.ne.s32.totalorder %s67, %s68
      %p79 = scmp.eq.s32.totalorder %s17, 0
      %p80 = por %p78, %p79
      %p81 = scmp.ne.s32.totalorder %s67, %s68
      %p82 = scmp.eq.s32.totalorder %s18, 1
      %p83 = por %p81, %p82
      %p85 = scmp.ne.s32.totalorder %s68, %s84
      %p86 = scmp.eq.s32.totalorder %s18, 0
      %p87 = por %p85, %p86
      %s88 = ssub.s32 %s19, %s31
      %p89 = scmp.eq.s32.totalorder %s88, 0
      %s91 = sadd.s32 %s90, 1
      %s92 = scalar_select %p89, %s90, %s91
      %p95 = pneg %p89
      %p96 = scmp.eq.s32.totalorder %s12, 1
      %p97 = por %p95, %p96
      %p98 = scmp.ne.s32.totalorder %s90, %s93
      %p99 = scmp.eq.s32.totalorder %s12, 0
      %p100 = por %p98, %p99
      %p101 = scmp.ne.s32.totalorder %s90, %s93
      %p102 = scmp.eq.s32.totalorder %s17, 1
      %p103 = por %p101, %p102
      %p104 = scmp.ne.s32.totalorder %s93, %s94
      %p105 = scmp.eq.s32.totalorder %s17, 0
      %p106 = por %p104, %p105
      %p107 = scmp.ne.s32.totalorder %s93, %s94
      %p108 = scmp.eq.s32.totalorder %s18, 1
      %p109 = por %p107, %p108
      %p111 = scmp.ne.s32.totalorder %s94, %s110
      %p112 = scmp.eq.s32.totalorder %s18, 0
      %p113 = por %p111, %p112
      %s114 = ssub.s32 %s19, %s31
      %p115 = scmp.eq.s32.totalorder %s114, 0
      %s117 = sadd.s32 %s116, 1
      %s118 = scalar_select %p115, %s116, %s117
      %p121 = pneg %p115
      %p122 = scmp.eq.s32.totalorder %s12, 1
      %p123 = por %p121, %p122
      %p124 = scmp.ne.s32.totalorder %s116, %s119
      %p125 = scmp.eq.s32.totalorder %s12, 0
      %p126 = por %p124, %p125
      %p127 = scmp.ne.s32.totalorder %s116, %s119
      %p128 = scmp.eq.s32.totalorder %s17, 1
      %p129 = por %p127, %p128
      %p130 = scmp.ne.s32.totalorder %s119, %s120
      %p131 = scmp.eq.s32.totalorder %s17, 0
      %p132 = por %p130, %p131
      %p133 = scmp.ne.s32.totalorder %s119, %s120
      %p134 = scmp.eq.s32.totalorder %s18, 1
      %p135 = por %p133, %p134
      %p137 = scmp.ne.s32.totalorder %s120, %s136
      %p138 = scmp.eq.s32.totalorder %s18, 0
      %p139 = por %p137, %p138
      %p140 = scmp.le.s32.totalorder 1, %s12
      %p141 = scmp.lt.s32.totalorder %s12, 3
      %p142 = pnand %p140, %p141
      %p143 = pneg %p142
      // Predicated region
      $region9: #{tpu_custom_call.1} parent=5 // pred_check
        _
      $region10: #{tpu_custom_call.1} parent=5 // pred_check_branch
        %145 = sbr.rel (%p142) target = $region12
      $region11: #{tpu_custom_call.1} parent=5 // pred_region
        %s146 = ssub.s32 %s12, 1
      $region12: #{tpu_custom_call.1} parent=5 // pred_fallthru
        _
      %p147 = scmp.lt.s32.totalorder %s12, 2
      // Predicated region
      $region13: #{tpu_custom_call.1} parent=5 // pred_check
        %p148 = pneg %p147
      $region14: #{tpu_custom_call.1} parent=5 // pred_check_branch
        %150 = sbr.rel (%p148) target = $region16
      $region15: #{tpu_custom_call.1} parent=5 // pred_region
        // Predicated region
        $region17: #{tpu_custom_call.1} parent=15 // pred_check
          %p151 = pneg %p46
        $region18: #{tpu_custom_call.1} parent=15 // pred_check_branch
          %153 = sbr.rel (%p151) target = $region20
        $region19: #{tpu_custom_call.1} parent=15 // pred_region
          %p154 = scmp.lt.s32.totalorder %s19, 1
          %s155 = scalar_select %p154, %s19, 1
          %p156 = scmp.lt.s32.totalorder %s20, 0
          %s157 = scalar_select %p156, %s20, 0
          %s158 = sadd.s32 %s157, %s155
          %s159 = smul.addr %s158, 8
          %s160 = scalar_lea.vmem %s0, %s159
        $region20: #{tpu_custom_call.1} parent=15 // pred_fallthru
          _
        // Predicated region
        $region21: #{tpu_custom_call.1} parent=15 // pred_check
          %p161 = pneg %p74
        $region22: #{tpu_custom_call.1} parent=15 // pred_check_branch
          %163 = sbr.rel (%p161) target = $region24
        $region23: #{tpu_custom_call.1} parent=15 // pred_region
          %s164 = sand.u32 %s64, 1
          %s165 = scalar_lea.sflag [#allocation6], %s164
          %s166 = sand.u32 %s64, 1
          %s167 = smul.addr %s166, 8
          %s168 = scalar_lea.vmem [#allocation5], %s167
          %s170 = ssub.s32 128, 128
          %171 = vsyncadd %s165, %s170
          %s172 = sadd.s32 %s20, %s19
          %s173 = smul.addr %s172, 128
          %s174 = scalar_lea.hbm %s1, %s173
          %s176 = sshll.u32 %s168, 4
          %s177 = int_to_ptr.vmem [resolvable:$true] %s176
          %179 = dma.hbm_to_vmem [thread:$0]  %s174, 128, %s177, %s165
        $region24: #{tpu_custom_call.1} parent=15 // pred_fallthru
          _
        // Predicated region
        $region25: #{tpu_custom_call.1} parent=15 // pred_check
          %p180 = pneg %p100
        $region26: #{tpu_custom_call.1} parent=15 // pred_check_branch
          %182 = sbr.rel (%p180) target = $region28
        $region27: #{tpu_custom_call.1} parent=15 // pred_region
          %p183 = scmp.lt.s32.totalorder %s19, 1
          %s184 = scalar_select %p183, %s19, 1
          %s185 = smul.addr %s184, 8
          %s186 = scalar_lea.vmem %s2, %s185
        $region28: #{tpu_custom_call.1} parent=15 // pred_fallthru
          _
      $region16: #{tpu_custom_call.1} parent=5 // pred_fallthru
        _
      %p187 = scmp.le.s32.totalorder 1, %s12
      %p188 = scmp.lt.s32.totalorder %s12, 3
      %p189 = pnand %p187, %p188
      %p190 = pneg %p189
      // Predicated region
      $region29: #{tpu_custom_call.1} parent=5 // pred_check
        _
      $region30: #{tpu_custom_call.1} parent=5 // pred_check_branch
        %192 = sbr.rel (%p189) target = $region32
      $region31: #{tpu_custom_call.1} parent=5 // pred_region
        %s193 = ssub.s32 %s12, 1
        %s194 = sand.u32 %s67, 1
        %s195 = scalar_lea.sflag [#allocation6], %s194
        %s196 = sand.u32 %s67, 1
        %s197 = smul.addr %s196, 8
        %s198 = scalar_lea.vmem [#allocation5], %s197
        // Predicated region
        $region33: #{tpu_custom_call.1} parent=31 // pred_check
          %p199 = pneg %p80
        $region34: #{tpu_custom_call.1} parent=31 // pred_check_branch
          %201 = sbr.rel (%p199) target = $region36
        $region35: #{tpu_custom_call.1} parent=31 // pred_region
          %202 = dma.done %s195, 128
        $region36: #{tpu_custom_call.1} parent=31 // pred_fallthru
          _
        %p203 = scmp.lt.s32.totalorder %s21, 1
        %s204 = scalar_select %p203, %s21, 1
        %p205 = scmp.lt.s32.totalorder %s22, 0
        %s206 = scalar_select %p205, %s22, 0
        %s207 = sadd.s32 %s206, %s204
        %s208 = smul.addr %s207, 8
        %s209 = scalar_lea.vmem %s0, %s208
        %p210 = pneg %p52
        %p211 = pneg %p49
        %s212 = sand.u32 %s67, 1
        %s213 = scalar_lea.sflag [#allocation6], %s212
        %s214 = sand.u32 %s67, 1
        %s215 = smul.addr %s214, 8
        %s216 = scalar_lea.vmem [#allocation5], %s215
        %p217 = pneg %p80
        %p218 = pneg %p77
        %p219 = scmp.lt.s32.totalorder %s21, 1
        %s220 = scalar_select %p219, %s21, 1
        %s221 = smul.addr %s220, 8
        %s222 = scalar_lea.vmem %s2, %s221
        %p223 = pneg %p106
        %p224 = pneg %p103
        %p225 = pneg %p132
        %p226 = pneg %p129
        %p227 = scmp.lt.s32.totalorder %s21, 1
        %s228 = scalar_select %p227, %s21, 1
        %s229 = smul.addr %s228, 8
        %s230 = scalar_lea.vmem %s3, %s229
        %p231 = scmp.lt.s32.totalorder %s21, 1
        %s232 = scalar_select %p231, %s21, 1
        %p233 = scmp.lt.s32.totalorder %s22, 0
        %s234 = scalar_select %p233, %s22, 0
        %s235 = sadd.s32 %s234, %s232
        %s236 = smul.addr %s235, 8
        %s237 = scalar_lea.vmem %s0, %s236
        %p238 = scmp.lt.s32.totalorder %s21, 1
        %s239 = scalar_select %p238, %s21, 1
        %s240 = smul.addr %s239, 8
        %s241 = scalar_lea.vmem %s2, %s240
        %p242 = scmp.lt.s32.totalorder %s21, 1
        %s243 = scalar_select %p242, %s21, 1
        %s244 = smul.addr %s243, 8
        %s245 = scalar_lea.vmem %s3, %s244
        %p246 = scmp.eq.s32.totalorder %s22, 0
        // Predicated region
        $region37: #{tpu_custom_call.1} parent=31 // pred_check
          %p247 = pneg %p246
        $region38: #{tpu_custom_call.1} parent=31 // pred_check_branch
          %249 = sbr.rel (%p247) target = $region40
        $region39: #{tpu_custom_call.1} parent=31 // pred_region
          %vm250 = vcmask 7168
          %251 = vst.msk [vmem:[#allocation2] sm:$0xff] %vm250, -1e+30
          %252 = vst.msk [vmem:[#allocation3] sm:$0xff] %vm250, 0.0
          %253 = vst.msk [vmem:[#allocation4] sm:$0xff] %vm250, 0.0
        $region40: #{tpu_custom_call.1} parent=31 // pred_fallthru
          _
        %v254 = vld [vmem:[%s237] sm:$0xff]
        %v255 = vld [vmem:[%s198] sm:$0xff]
        %v256 = vmul.f32 %v254, %v254
        %v257 = vmul.f32 %v255, %v255
        %v258 = vadd.f32 %v256, %v257
        %v259 = vlaneseq
        %v260 = vand.u32 %v259, 127
        %s261 = smul.u32 %s22, 128
        %v262 = vstv %s261
        %v263 = vadd.s32 %v260, %v262
        %v264 = vld [vmem:[%s241] sm:$0xff]
        %v265 = vld [vmem:[#allocation4] sm:$0xff]
        %266 = vset.pattern.permute.xlu0 0
        %267 = vperm.xlu0 %266, %v264
        %v268 = vpop.permute.xlu0 %267
        %vm269 = vcmp.eq.s32.totalorder %v263, %v268
        %v270 = vsel %vm269, %v258, 0.0
        %271 = vadd.xlane.f32.xlu0 %v270
        %v272 = vpop.xlane.xlu0 %271
        %v273 = vadd.f32 %v265, %v272
        %vm274 = vcmask 7168
        %275 = vst.msk [vmem:[#allocation4] sm:$0xff] %vm274, %v273
        %v276 = vld [vmem:[#allocation2] sm:$0xff]
        %277 = vmax.xlane.f32.xlu0 %v258
        %v278 = vpop.xlane.xlu0 %277
        %v279 = vmax.f32 %v276, %v278
        %v280 = vsub.f32 %v276, %v279
        %v281 = vmul.f32 %v280, 1.442695
        %v282 = vpow.pop %v281
        %v283 = vld [vmem:[#allocation3] sm:$0xff]
        %v284 = vmul.f32 %v282, %v283
        %286 = vset.pattern.permute.xlu0 0
        %287 = vperm.xlu0 %286, %v279
        %v288 = vpop.permute.xlu0 %287
        %v290 = vsub.f32 %v258, %v288
        %v291 = vmul.f32 %v290, 1.442695
        %v292 = vpow.pop %v291
        %293 = vadd.xlane.f32.xlu0 %v292
        %v294 = vpop.xlane.xlu0 %293
        %v295 = vadd.f32 %v284, %v294
        %296 = vst.msk [vmem:[#allocation3] sm:$0xff] %vm274, %v295
        %297 = vst.msk [vmem:[#allocation2] sm:$0xff] %vm274, %v279
        // Predicated region
        $region41: #{tpu_custom_call.1} parent=31 // pred_check
          %p298 = pneg %p246
        $region42: #{tpu_custom_call.1} parent=31 // pred_check_branch
          %300 = sbr.rel (%p298) target = $region44
        $region43: #{tpu_custom_call.1} parent=31 // pred_region
          %vm301 = vcmp.ne.s32.totalorder %v264, 4294967196
          %v302 = vld [vmem:[#allocation2] sm:$0xff]
          %v303 = vld [vmem:[#allocation3] sm:$0xff]
          %v304 = vlog2.pop %v303
          %v305 = vmul.f32 %v304, 0.6931472
          %v306 = vadd.f32 %v302, %v305
          %v307 = vld [vmem:[#allocation4] sm:$0xff]
          %v308 = vsub.f32 %v306, %v307
          %v309 = vsel %vm301, %v308, 0.0
          %310 = vst.msk [vmem:[%s245] sm:$0xff] %vm274, %v309
        $region44: #{tpu_custom_call.1} parent=31 // pred_fallthru
          _
        %p311 = scmp.lt.s32.totalorder %s21, 1
        %s312 = scalar_select %p311, %s21, 1
        %s313 = smul.addr %s312, 8
        %s314 = scalar_lea.vmem %s3, %s313
        // Predicated region
        $region45: #{tpu_custom_call.1} parent=31 // pred_check
          %p315 = pneg %p129
        $region46: #{tpu_custom_call.1} parent=31 // pred_check_branch
          %317 = sbr.rel (%p315) target = $region48
        $region47: #{tpu_custom_call.1} parent=31 // pred_region
          _
        $region48: #{tpu_custom_call.1} parent=31 // pred_fallthru
          _
      $region32: #{tpu_custom_call.1} parent=5 // pred_fallthru
        _
      %p318 = scmp.le.s32.totalorder 2, %s12
      // Predicated region
      $region49: #{tpu_custom_call.1} parent=5 // pred_check
        %p319 = pneg %p318
      $region50: #{tpu_custom_call.1} parent=5 // pred_check_branch
        %321 = sbr.rel (%p319) target = $region52
      $region51: #{tpu_custom_call.1} parent=5 // pred_region
        %s322 = ssub.s32 %s12, 2
        // Predicated region
        $region53: #{tpu_custom_call.1} parent=51 // pred_check
          %p323 = pneg %p135
        $region54: #{tpu_custom_call.1} parent=51 // pred_check_branch
          %325 = sbr.rel (%p323) target = $region56
        $region55: #{tpu_custom_call.1} parent=51 // pred_region
          %p326 = scmp.lt.s32.totalorder %s23, 1
          %s327 = scalar_select %p326, %s23, 1
          %s328 = smul.addr %s327, 8
          %s329 = scalar_lea.vmem %s3, %s328
        $region56: #{tpu_custom_call.1} parent=51 // pred_fallthru
          _
      $region52: #{tpu_custom_call.1} parent=5 // pred_fallthru
        _
    $region6: #{tpu_custom_call.1} parent=1 // loop_footer
      %s16 = sadd.s32 1, %s12
    $region7: #{tpu_custom_call.1} parent=1 // loop_footer_branch
      %11 = sbr.rel target = $region3
    $region8: #{tpu_custom_call.1} parent=1 // loop_exit
      _
    %330 = vsyncpa [#allocation6], 1
    %s331 = scalar_lea.sflag [#allocation6], 1
    %332 = vsyncpa %s331, 1

</llo_original>
